<compile_context>
chip_gen: v6e
topology: v6e:2x2x1
jax: 0.10.0
libtpu: 0.0.40
codegen_flags: <defaults>
</compile_context>

<pallas_src>
import functools

import numpy as np

import jax
import jax.numpy as jnp
from jax.experimental import pallas as pl
from jax.experimental.pallas import tpu as pltpu

_MIB = 1024 * 1024


# --------------------------------------------------------------------------- #
# Device / VMEM helpers
# --------------------------------------------------------------------------- #
def _device_kind() -> str:
    try:
        return jax.devices()[0].device_kind.lower()
    except Exception:
        return ""


def _num_tensorcores() -> int:
    # v7x has 2 TensorCores per chip; v5e / v6e have 1.
    return 2 if "v7" in _device_kind() else 1


def _vmem_limit_bytes() -> int:
    try:
        cap = int(pltpu.get_tpu_info().vmem_capacity_bytes)
    except Exception:
        cap = 64 * _MIB                      # conservative (v7x-sized) fallback
    # v5e/v6e: 128 MiB physical -> 64 MiB scoped; v7x: 64 MiB -> 32 MiB.
    return max(32 * _MIB, min(cap // 2, 64 * _MIB))


# --------------------------------------------------------------------------- #
# Band matrix: W[t, j] = #{d in [-pad, pad] : clamp(t + d, 0, L-1) == j}
# (exact small integers; replicate padding folded into the boundary columns)
# --------------------------------------------------------------------------- #
def _band_weights(seq_len, kernel_size, dtype):
    pad = (kernel_size - 1) // 2
    t = np.arange(seq_len)[:, None]
    j = np.arange(seq_len)[None, :]
    lo, hi = t - pad, t + pad
    w = ((j >= np.maximum(lo, 0)) & (j <= np.minimum(hi, seq_len - 1))).astype(np.float64)
    w[:, 0] += np.maximum(0, -lo)[:, 0]                    # clamped-to-front counts
    w[:, -1] += np.maximum(0, hi - (seq_len - 1))[:, 0]    # clamped-to-back counts
    return jnp.asarray(w, dtype=dtype)


# --------------------------------------------------------------------------- #
# Kernels
# --------------------------------------------------------------------------- #
def _decomp_roll_kernel(x_ref, res_ref, mean_ref, *, kernel_size, acc_dtype):
    """Moving average via XLU rolls + boundary selects (no concat, no misaligned slices)."""
    pad = (kernel_size - 1) // 2
    x = x_ref[...]                                        # (TB, L, TC)
    xa = x.astype(acc_dtype)
    tb, seq, tc = xa.shape

    if pad == 0 or seq == 1:
        mean = xa
    else:
        # Hoisted boundary rows (broadcast once, reused by every select below).
        first = jnp.broadcast_to(xa[:, 0:1, :], xa.shape)
        last = jnp.broadcast_to(xa[:, seq - 1:seq, :], xa.shape)
        t_idx = jax.lax.broadcasted_iota(jnp.int32, xa.shape, 1)

        # Two running accumulators: shallow dependency chain, tiny live set.
        acc0 = xa
        acc1 = None
        for d in range(1, pad + 1):
            # value x[t + d] at row t (circular roll), replicate-fix the tail wrap
            fwd = pltpu.roll(xa, shift=seq - d, axis=1)
            fwd = jnp.where(t_idx >= seq - d, last, fwd)
            # value x[t - d] at row t (circular roll), replicate-fix the head wrap
            bwd = pltpu.roll(xa, shift=d, axis=1)
            bwd = jnp.where(t_idx < d, first, bwd)
            pair = fwd + bwd
            if acc1 is None:
                acc1 = pair
            elif d % 2 == 0:
                acc0 = acc0 + pair
            else:
                acc1 = acc1 + pair
        total = acc0 if acc1 is None else acc0 + acc1
        mean = total * (1.0 / kernel_size)                # weak scalar: keeps acc_dtype

    mean_ref[...] = mean.astype(mean_ref.dtype)
    res_ref[...] = (xa - mean).astype(res_ref.dtype)


def _decomp_matmul_kernel(w_ref, x_ref, res_ref, mean_ref, *, kernel_size):
    """Moving average as a banded (L, L) averaging matmul on the MXU."""
    w = w_ref[...]                                        # (L, L) integer band counts
    inv_k = 1.0 / kernel_size
    tb = x_ref.shape[0]
    for b in range(tb):                                   # small, statically unrolled
        xb = x_ref[b]                                     # (L, TC)
        mean = jnp.dot(w, xb.astype(w.dtype),
                       preferred_element_type=jnp.float32) * inv_k
        mean_ref[b] = mean.astype(mean_ref.dtype)
        res_ref[b] = (xb.astype(jnp.float32) - mean).astype(res_ref.dtype)


# --------------------------------------------------------------------------- #
# Wrapper
# --------------------------------------------------------------------------- #
def series_decomp(x, kernel_size):
    """Pallas series_decomp: x (B, L, C) -> (res, moving_mean), both (B, L, C)."""
    assert kernel_size % 2 == 1, "series_decomp expects an odd kernel_size"
    assert x.ndim == 3
    B, L, C = x.shape
    itemsize = x.dtype.itemsize

    kind = _device_kind()
    n_cores = _num_tensorcores()
    vmem_limit = _vmem_limit_bytes()
    budget = int(vmem_limit * 0.70)            # headroom under the scoped limit

    # Path selection: MXU band matmul only pays off when the channel tile is
    # lane-dense (>=128 lanes); it is also the fully general fallback when the
    # window does not fit inside the sequence (roll boundary fix needs k <= L).
    use_matmul = (C >= 128) or (kernel_size > L)
    w_dtype = jnp.bfloat16 if (x.dtype == jnp.bfloat16 and kernel_size <= 256) else jnp.float32
    w_bytes = 2 * L * L * np.dtype(w_dtype).itemsize      # double-buffered resident W
    if use_matmul and kernel_size <= L and w_bytes > budget // 2:
        use_matmul = False                     # W would dominate VMEM; roll needs none

    if use_matmul:
        if C < 128:
            TC = C
        elif C >= 512:
            TC = 512
        elif C >= 256:
            TC = 256
        else:
            TC = 128
        nc = pl.cdiv(C, TC)
        w = _band_weights(L, kernel_size, w_dtype)
        row_io = 3 * 2 * L * TC * itemsize     # (1 in + 2 out) x double buffer
        scratch = 4 * L * TC * 4               # per-row f32 temps in the unrolled body
        TB = int(max(1, min(B, 8, (budget - w_bytes - scratch) // max(1, row_io))))
        flops = 2 * B * L * L * C + 2 * B * L * C
        kernel = functools.partial(_decomp_matmul_kernel, kernel_size=kernel_size)
    else:
        TC = C
        nc = 1
        # v6e/v7x have bf16 VALU: keep bf16 data 16-bit on chip; upcast on v5e.
        acc_dtype = jnp.float32
        if x.dtype == jnp.bfloat16 and "v5" not in kind:
            acc_dtype = jnp.bfloat16
        acc_isize = np.dtype(acc_dtype).itemsize
        row_io = 3 * 2 * L * TC * itemsize
        row_scratch = 10 * L * TC * acc_isize  # xa/first/last/iota/fwd/bwd/pair/accs
        TB = int(max(1, min(B, budget // max(1, row_io + row_scratch))))
        flops = 2 * kernel_size * B * L * C
        kernel = functools.partial(_decomp_roll_kernel,
                                   kernel_size=kernel_size, acc_dtype=acc_dtype)

    nb = pl.cdiv(B, TB)
    # Manufacture extra (parallel) grid steps only when there is more than one
    # TensorCore to feed (v7x); on v5e/v6e the grid is a serial loop and smaller
    # blocks just add ~0.35us/step.  Never drop below ~1 MiB of IO per step.
    if n_cores > 1:
        while TB > 1 and nb * nc < 2 * n_cores and (TB // 2) * L * TC * itemsize >= _MIB:
            TB = max(1, TB // 2)
            nb = pl.cdiv(B, TB)

    block = (TB, L, TC)
    idx_map = lambda b, c: (b, 0, c)

    # v7x only: deeper input pipelining to hide per-step DMA issue latency.
    x_spec = pl.BlockSpec(block, idx_map)
    if "v7" in kind:
        try:
            x_spec = pl.BlockSpec(block, idx_map, pipeline_mode=pl.Buffered(3))
        except TypeError:
            x_spec = pl.BlockSpec(block, idx_map)

    if use_matmul:
        in_specs = [pl.BlockSpec((L, L), lambda b, c: (0, 0)), x_spec]
        operands = (w, x)
    else:
        in_specs = [x_spec]
        operands = (x,)

    out_shape = (
        jax.ShapeDtypeStruct((B, L, C), x.dtype),   # res
        jax.ShapeDtypeStruct((B, L, C), x.dtype),   # moving_mean
    )
    out_specs = [pl.BlockSpec(block, idx_map), pl.BlockSpec(block, idx_map)]

    res, mean = pl.pallas_call(
        kernel,
        out_shape=out_shape,
        grid_spec=pltpu.PrefetchScalarGridSpec(
            num_scalar_prefetch=0,
            grid=(nb, nc),
            in_specs=in_specs,
            out_specs=out_specs,
        ),
        compiler_params=pltpu.CompilerParams(
            dimension_semantics=("parallel", "parallel"),
            vmem_limit_bytes=vmem_limit,
        ),
        cost_estimate=pl.CostEstimate(
            flops=int(flops),
            transcendentals=0,
            bytes_accessed=int(3 * B * L * C * itemsize),
        ),
    )(*operands)
    return res, mean


# --------------------------------------------------------------------------- #
# Pure-JAX reference (PyTorch semantics) and self-test
# --------------------------------------------------------------------------- #
def _reference(x, kernel_size):
    pad = (kernel_size - 1) // 2
    front = jnp.repeat(x[:, 0:1, :], pad, axis=1)
    end = jnp.repeat(x[:, -1:, :], pad, axis=1)
    xpad = jnp.concatenate([front, x, end], axis=1)
    L = x.shape[1]
    mean = sum(xpad[:, i:i + L, :] for i in range(kernel_size)) / kernel_size
    return x - mean, mean


if __name__ == "__main__":
    key = jax.random.PRNGKey(0)
    k1, k2 = jax.random.split(key)

    # 1) Small-channel DLinear regime (roll/XLU path): B=2, L=16, C=8, k=5.
    x1 = jax.random.normal(k1, (2, 16, 8), dtype=jnp.float32)
    res1, mean1 = series_decomp(x1, 5)
    jax.block_until_ready((res1, mean1))
    r1, m1 = _reference(x1, 5)
    assert res1.shape == x1.shape and mean1.shape == x1.shape
    assert jnp.allclose(mean1, m1, atol=1e-5, rtol=1e-5)
    assert jnp.allclose(res1, r1, atol=1e-5, rtol=1e-5)

    # 2) Lane-dense channels, non-divisible by the 128-wide tile (MXU band-
    #    matmul path, exercises the OOB edge block).  Values rounded to bf16 so
    #    the comparison is insensitive to the MXU's f32-matmul pass selection.
    x2 = jax.random.normal(k2, (3, 16, 200), dtype=jnp.float32)
    x2 = x2.astype(jnp.bfloat16).astype(jnp.float32)
    res2, mean2 = series_decomp(x2, 7)
    jax.block_until_ready((res2, mean2))
    r2, m2 = _reference(x2, 7)
    assert res2.shape == x2.shape and mean2.shape == x2.shape
    assert jnp.allclose(mean2, m2, atol=1e-5, rtol=1e-5)
    assert jnp.allclose(res2, r2, atol=1e-5, rtol=1e-5)

    print("KERNEL_OK")
</pallas_src>

<mosaic_0001>
module attributes {stable_mosaic.version = 11 : i64} {
  func.func @_decomp_roll_kernel(%arg0: i32, %arg1: i32, %arg2: memref<2x16x8xf32, #tpu.memory_space<vmem>>, %arg3: memref<2x16x8xf32, #tpu.memory_space<vmem>>, %arg4: memref<2x16x8xf32, #tpu.memory_space<vmem>>) attributes {dimension_semantics = [#tpu.dimension_semantics<parallel>, #tpu.dimension_semantics<parallel>], iteration_bounds = array<i64: 1, 1>, scalar_prefetch = 0 : i64, scratch_operands = 0 : i64, tpu.core_type = #tpu.core_type<tc>, window_params = [{transform_indices = @transform_0, window_bounds = array<i64: 2, 16, 8>}, {transform_indices = @transform_1, window_bounds = array<i64: 2, 16, 8>}, {transform_indices = @transform_2, window_bounds = array<i64: 2, 16, 8>}]} {
    %c0 = arith.constant 0 : index
    %c0_0 = arith.constant 0 : index
    %c0_1 = arith.constant 0 : index
    %0 = vector.load %arg2[%c0, %c0_0, %c0_1] : memref<2x16x8xf32, #tpu.memory_space<vmem>>, vector<2x16x8xf32>
    %1 = vector.extract_strided_slice %0 {offsets = [0, 0, 0], sizes = [2, 1, 8], strides = [1, 1, 1]} : vector<2x16x8xf32> to vector<2x1x8xf32>
    %2 = vector.shape_cast %1 : vector<2x1x8xf32> to vector<2x1x8xf32>
    %3 = vector.broadcast %2 : vector<2x1x8xf32> to vector<2x16x8xf32>
    %4 = vector.extract_strided_slice %0 {offsets = [0, 15, 0], sizes = [2, 1, 8], strides = [1, 1, 1]} : vector<2x16x8xf32> to vector<2x1x8xf32>
    %5 = vector.shape_cast %4 : vector<2x1x8xf32> to vector<2x1x8xf32>
    %6 = vector.broadcast %5 : vector<2x1x8xf32> to vector<2x16x8xf32>
    %7 = tpu.iota {dimensions = array<i32: 1>} : vector<2x16x8xi32>
    %c15_i32 = arith.constant 15 : i32
    %8 = tpu.dynamic_rotate %0 by %c15_i32 dim 1 : vector<2x16x8xf32>, i32 -> vector<2x16x8xf32>
    %c15_i32_2 = arith.constant 15 : i32
    %9 = vector.broadcast %c15_i32_2 : i32 to vector<2x16x8xi32>
    %10 = arith.cmpi sge, %7, %9 : vector<2x16x8xi32>
    %11 = arith.select %10, %6, %8 : vector<2x16x8xi1>, vector<2x16x8xf32>
    %c1_i32 = arith.constant 1 : i32
    %12 = tpu.dynamic_rotate %0 by %c1_i32 dim 1 : vector<2x16x8xf32>, i32 -> vector<2x16x8xf32>
    %c1_i32_3 = arith.constant 1 : i32
    %13 = vector.broadcast %c1_i32_3 : i32 to vector<2x16x8xi32>
    %14 = arith.cmpi slt, %7, %13 : vector<2x16x8xi32>
    %15 = arith.select %14, %3, %12 : vector<2x16x8xi1>, vector<2x16x8xf32>
    %16 = arith.addf %11, %15 : vector<2x16x8xf32>
    %c14_i32 = arith.constant 14 : i32
    %17 = tpu.dynamic_rotate %0 by %c14_i32 dim 1 : vector<2x16x8xf32>, i32 -> vector<2x16x8xf32>
    %c14_i32_4 = arith.constant 14 : i32
    %18 = vector.broadcast %c14_i32_4 : i32 to vector<2x16x8xi32>
    %19 = arith.cmpi sge, %7, %18 : vector<2x16x8xi32>
    %20 = arith.select %19, %6, %17 : vector<2x16x8xi1>, vector<2x16x8xf32>
    %c2_i32 = arith.constant 2 : i32
    %21 = tpu.dynamic_rotate %0 by %c2_i32 dim 1 : vector<2x16x8xf32>, i32 -> vector<2x16x8xf32>
    %c2_i32_5 = arith.constant 2 : i32
    %22 = vector.broadcast %c2_i32_5 : i32 to vector<2x16x8xi32>
    %23 = arith.cmpi slt, %7, %22 : vector<2x16x8xi32>
    %24 = arith.select %23, %3, %21 : vector<2x16x8xi1>, vector<2x16x8xf32>
    %25 = arith.addf %20, %24 : vector<2x16x8xf32>
    %26 = arith.addf %0, %25 : vector<2x16x8xf32>
    %27 = arith.addf %26, %16 : vector<2x16x8xf32>
    %cst = arith.constant 2.000000e-01 : f32
    %28 = vector.broadcast %cst : f32 to vector<2x16x8xf32>
    %29 = arith.mulf %27, %28 : vector<2x16x8xf32>
    %c0_6 = arith.constant 0 : index
    %c0_7 = arith.constant 0 : index
    %c0_8 = arith.constant 0 : index
    %30 = vector.load %arg4[%c0_6, %c0_7, %c0_8] : memref<2x16x8xf32, #tpu.memory_space<vmem>>, vector<2x16x8xf32>
    tpu.vector_store %arg4[%c0_6, %c0_7, %c0_8], %29 {strides = array<i32>} : memref<2x16x8xf32, #tpu.memory_space<vmem>>, vector<2x16x8xf32>,
    %31 = arith.subf %0, %29 : vector<2x16x8xf32>
    %c0_9 = arith.constant 0 : index
    %c0_10 = arith.constant 0 : index
    %c0_11 = arith.constant 0 : index
    %32 = vector.load %arg3[%c0_9, %c0_10, %c0_11] : memref<2x16x8xf32, #tpu.memory_space<vmem>>, vector<2x16x8xf32>
    tpu.vector_store %arg3[%c0_9, %c0_10, %c0_11], %31 {strides = array<i32>} : memref<2x16x8xf32, #tpu.memory_space<vmem>>, vector<2x16x8xf32>,
    return
  }
  func.func @transform_0(%arg0: i32, %arg1: i32) -> (i32, i32, i32) {
    %c0_i32 = arith.constant 0 : i32
    %c0_i32_0 = arith.constant 0 : i32
    return %arg0, %c0_i32, %arg1 : i32, i32, i32
  }
  func.func @transform_1(%arg0: i32, %arg1: i32) -> (i32, i32, i32) {
    %c0_i32 = arith.constant 0 : i32
    %c0_i32_0 = arith.constant 0 : i32
    return %arg0, %c0_i32, %arg1 : i32, i32, i32
  }
  func.func @transform_2(%arg0: i32, %arg1: i32) -> (i32, i32, i32) {
    %c0_i32 = arith.constant 0 : i32
    %c0_i32_0 = arith.constant 0 : i32
    return %arg0, %c0_i32, %arg1 : i32, i32, i32
  }
}

</mosaic_0001>

<llo_original>
// kernel: tpu_custom_call.1
$region0: #{tpu_custom_call.1}
  #allocation0 [shape = 'u32[]', space=smem, size = 0x4, offset = 0x4, fixed_abs, tag = 'smem constant byte address 0x4 - core index']
  #allocation1 [shape = 'u32[144,128]{1,0:T(1,128)}', space=vmem, size = 0x12000, scoped, tag = 'internal scratch']
  %s0 = inlined_call_operand.vmem [shape: f32[2,16,8], index: 0, kind: input, shape index: {}]
  %s1 = inlined_call_operand.vmem [shape: f32[2,16,8], index: 1, kind: output, shape index: {0}]
  %s2 = inlined_call_operand.vmem [shape: f32[2,16,8], index: 2, kind: output, shape index: {1}]
  %3 = xla_tuple %s1, %s2
  %s4 = sld [smem:[#allocation0]]
  $region22: #{tpu_custom_call.1} parent=0
    _
  %s6 = ssub.s32 1, %s4
  %s7 = scalar_select 0, %s6, %s4
  // Predicated region
  $region2: #{tpu_custom_call.1} parent=0 // pred_check
    _
  $region3: #{tpu_custom_call.1} parent=0 // pred_check_branch
    %9 = sbr.rel (0) target = $region5
  $region4: #{tpu_custom_call.1} parent=0 // pred_region
    _
  $region5: #{tpu_custom_call.1} parent=0 // pred_fallthru
    _
  %v10 = vld [vmem:[%s0] sm:$0xff]
  %v11 = vld [vmem:[%s0 + $0x8] sm:$0xff]
  %v12 = vld [vmem:[%s0 + $0x10] sm:$0xff]
  %v13 = vld [vmem:[%s0 + $0x18] sm:$0xff]
  %v14 = vlaneseq
  %v15 = vshrl.u32 %v14, 7
  %v16 = vsub.s32 0, %v15
  %v17 = vrot.slane %v10, %v16
  %v18 = vlaneseq
  %v19 = vshrl.u32 %v18, 7
  %v20 = vsub.s32 0, %v19
  %v21 = vrot.slane %v12, %v20
  %v22 = vlaneseq
  %v23 = vshrl.u32 %v22, 7
  %v24 = vsub.s32 7, %v23
  %v25 = vrot.slane %v11, %v24
  %v26 = vlaneseq
  %v27 = vshrl.u32 %v26, 7
  %v28 = vsub.s32 7, %v27
  %v29 = vrot.slane %v13, %v28
  %v30 = vlaneseq
  %v31 = vshrl.u32 %v30, 7
  %v32 = vadd.s32 %v31, 8
  %v33 = vrot.slane %v10, 1
  %v34 = vrot.slane %v12, 1
  %v35 = vrot.slane %v11, 1
  %v36 = vrot.slane %v13, 1
  %vm37 = vcmp.lt.s32.totalorder %v31, 7
  %v38 = vsel %vm37, %v33, %v35
  %v39 = vsel %vm37, %v34, %v36
  %v40 = vsel %vm37, %v35, %v33
  %v41 = vsel %vm37, %v36, %v34
  %vm42 = vcmp.ge.s32.totalorder %v31, 15
  %vm43 = vcmp.ge.s32.totalorder %v32, 15
  %v44 = vsel %vm42, %v25, %v38
  %v45 = vsel %vm43, %v25, %v40
  %v46 = vsel %vm42, %v29, %v39
  %v47 = vsel %vm43, %v29, %v41
  %v48 = vrot.slane %v10, 7
  %v49 = vrot.slane %v12, 7
  %v50 = vrot.slane %v11, 7
  %v51 = vrot.slane %v13, 7
  %vm52 = vcmp.lt.s32.totalorder %v31, 1
  %v53 = vsel %vm52, %v48, %v50
  %v54 = vsel %vm52, %v49, %v51
  %v55 = vsel %vm52, %v50, %v48
  %v56 = vsel %vm52, %v51, %v49
  %vm57 = vcmp.lt.s32.totalorder %v32, 1
  %v58 = vsel %vm52, %v17, %v55
  %v59 = vsel %vm57, %v17, %v53
  %v60 = vsel %vm52, %v21, %v56
  %v61 = vsel %vm57, %v21, %v54
  %v62 = vadd.f32 %v44, %v58
  %v63 = vadd.f32 %v45, %v59
  %v64 = vadd.f32 %v46, %v60
  %v65 = vadd.f32 %v47, %v61
  %v66 = vrot.slane %v10, 2
  %v67 = vrot.slane %v12, 2
  %v68 = vrot.slane %v11, 2
  %v69 = vrot.slane %v13, 2
  %vm70 = vcmp.lt.s32.totalorder %v31, 6
  %v71 = vsel %vm70, %v66, %v68
  %v72 = vsel %vm70, %v67, %v69
  %v73 = vsel %vm70, %v68, %v66
  %v74 = vsel %vm70, %v69, %v67
  %vm75 = vcmp.ge.s32.totalorder %v31, 14
  %vm76 = vcmp.ge.s32.totalorder %v32, 14
  %v77 = vsel %vm75, %v25, %v71
  %v78 = vsel %vm76, %v25, %v73
  %v79 = vsel %vm75, %v29, %v72
  %v80 = vsel %vm76, %v29, %v74
  %v81 = vrot.slane %v10, 6
  %v82 = vrot.slane %v12, 6
  %v83 = vrot.slane %v11, 6
  %v84 = vrot.slane %v13, 6
  %vm85 = vcmp.lt.s32.totalorder %v31, 2
  %v86 = vsel %vm85, %v81, %v83
  %v87 = vsel %vm85, %v82, %v84
  %v88 = vsel %vm85, %v83, %v81
  %v89 = vsel %vm85, %v84, %v82
  %vm90 = vcmp.lt.s32.totalorder %v32, 2
  %v91 = vsel %vm85, %v17, %v88
  %v92 = vsel %vm90, %v17, %v86
  %v93 = vsel %vm85, %v21, %v89
  %v94 = vsel %vm90, %v21, %v87
  %v95 = vadd.f32 %v77, %v91
  %v96 = vadd.f32 %v78, %v92
  %v97 = vadd.f32 %v79, %v93
  %v98 = vadd.f32 %v80, %v94
  %v99 = vadd.f32 %v10, %v95
  %v100 = vadd.f32 %v11, %v96
  %v101 = vadd.f32 %v12, %v97
  %v102 = vadd.f32 %v13, %v98
  %v103 = vadd.f32 %v99, %v62
  %v104 = vadd.f32 %v100, %v63
  %v105 = vadd.f32 %v101, %v64
  %v106 = vadd.f32 %v102, %v65
  %v107 = vmul.f32 %v103, 0.2
  %v108 = vmul.f32 %v104, 0.2
  %v109 = vmul.f32 %v105, 0.2
  %v110 = vmul.f32 %v106, 0.2
  %vm111 = vcmask 64512
  %112 = vst.msk [vmem:[%s2] sm:$0xff] %vm111, %v107
  %113 = vst.msk [vmem:[%s2 + $0x8] sm:$0xff] %vm111, %v108
  %114 = vst.msk [vmem:[%s2 + $0x10] sm:$0xff] %vm111, %v109
  %115 = vst.msk [vmem:[%s2 + $0x18] sm:$0xff] %vm111, %v110
  %v116 = vsub.f32 %v10, %v107
  %v117 = vsub.f32 %v11, %v108
  %v118 = vsub.f32 %v12, %v109
  %v119 = vsub.f32 %v13, %v110
  %120 = vst.msk [vmem:[%s1] sm:$0xff] %vm111, %v116
  %121 = vst.msk [vmem:[%s1 + $0x8] sm:$0xff] %vm111, %v117
  %122 = vst.msk [vmem:[%s1 + $0x10] sm:$0xff] %vm111, %v118
  %123 = vst.msk [vmem:[%s1 + $0x18] sm:$0xff] %vm111, %v119
  // Predicated region
  $region6: #{tpu_custom_call.1} parent=0 // pred_check
    _
  $region7: #{tpu_custom_call.1} parent=0 // pred_check_branch
    %125 = sbr.rel (0) target = $region9
  $region8: #{tpu_custom_call.1} parent=0 // pred_region
    _
  $region9: #{tpu_custom_call.1} parent=0 // pred_fallthru
    _
  // Predicated region
  $region10: #{tpu_custom_call.1} parent=0 // pred_check
    _
  $region11: #{tpu_custom_call.1} parent=0 // pred_check_branch
    %127 = sbr.rel (0) target = $region13
  $region12: #{tpu_custom_call.1} parent=0 // pred_region
    _
  $region13: #{tpu_custom_call.1} parent=0 // pred_fallthru
    _
  // Predicated region
  $region14: #{tpu_custom_call.1} parent=0 // pred_check
    _
  $region15: #{tpu_custom_call.1} parent=0 // pred_check_branch
    %129 = sbr.rel (0) target = $region17
  $region16: #{tpu_custom_call.1} parent=0 // pred_region
    _
  $region17: #{tpu_custom_call.1} parent=0 // pred_fallthru
    _
  // Predicated region
  $region18: #{tpu_custom_call.1} parent=0 // pred_check
    _
  $region19: #{tpu_custom_call.1} parent=0 // pred_check_branch
    %131 = sbr.rel (0) target = $region21
  $region20: #{tpu_custom_call.1} parent=0 // pred_region
    _
  $region21: #{tpu_custom_call.1} parent=0 // pred_fallthru
    _

</llo_original>
